<compile_context>
chip_gen: v6e
topology: v6e:2x2x1
jax: 0.10.0
libtpu: 0.0.40
codegen_flags: <defaults>
</compile_context>

<pallas_src>
import jax
import jax.numpy as jnp
from jax.experimental import pallas as pl
from jax.experimental.pallas import tpu as pltpu

HID = 5      # true hidden width of the middle Linear layers
OUT = 2      # true output width


# ----------------------------------------------------------------------------
# Kernel: one folded affine map on compact operands.
#   x_ref: (1, K)   w_ref: (OUT, K)   b_ref: (OUT, 1)   o_ref: (OUT, 1)
# VPU multiply (sublane-broadcast of x) + XLU lane reduce + bias add.
# ----------------------------------------------------------------------------
def _folded_affine_kernel(x_ref, w_ref, b_ref, o_ref):
    xw = x_ref[...] * w_ref[...]               # (OUT, K), VPU
    s = jnp.sum(xw, axis=1, keepdims=True)     # (OUT, 1), cross-lane reduce
    o_ref[...] = s + b_ref[...]                # bias added where produced


# ----------------------------------------------------------------------------
# Parameter init (nn.Linear-style uniform +-1/sqrt(fan_in)), deterministic.
# ----------------------------------------------------------------------------
def init_params(key, num_layers, input_size):
    ks = jax.random.split(key, 2 * (num_layers + 2))

    def lin(kw, kb, fan_in, fan_out):
        bound = 1.0 / jnp.sqrt(float(fan_in))
        w = jax.random.uniform(kw, (fan_out, fan_in), jnp.float32, -bound, bound)
        b = jax.random.uniform(kb, (fan_out,), jnp.float32, -bound, bound)
        return w, b

    w1, b1 = lin(ks[0], ks[1], input_size, HID)
    wm, bm = [], []
    for l in range(num_layers):
        w, b = lin(ks[2 + 2 * l], ks[3 + 2 * l], HID, HID)
        wm.append(w)
        bm.append(b)
    wm = jnp.stack(wm)                      # (L, 5, 5)
    bm = jnp.stack(bm)                      # (L, 5)
    wo, bo = lin(ks[2 + 2 * num_layers], ks[3 + 2 * num_layers], HID, OUT)
    return w1, b1, wm, bm, wo, bo


# ----------------------------------------------------------------------------
# One-time prep: fold the activation-free linear chain into (A, c).
# Stored compactly: A as (OUT, K) f32 (K along lanes), c as (OUT, 1) f32.
# Runs once per parameter set; NOT in the per-call hot path.
# ----------------------------------------------------------------------------
def prepare_folded_params(params):
    w1, b1, wm, bm, wo, bo = params
    A = w1                                  # (5, K)
    c = b1                                  # (5,)
    for l in range(wm.shape[0]):
        A = wm[l] @ A
        c = wm[l] @ c + bm[l]
    A = wo @ A                              # (2, K)
    c = wo @ c + bo                         # (2,)
    w_fold = jax.device_put(A.astype(jnp.float32))          # (OUT, K)
    b_fold = jax.device_put(c.astype(jnp.float32).reshape(OUT, 1))
    return w_fold, b_fold


# ----------------------------------------------------------------------------
# Per-call forward: flatten x (free), single grid-less pallas_call with all
# operands whole-array resident in VMEM.  Output is the true (2,)-sized
# result; no padding, no trailing slice fusion.
# ----------------------------------------------------------------------------
@jax.jit
def test_net_forward(x, w_fold, b_fold):
    x_flat = x.reshape(1, -1).astype(jnp.float32)           # (1, K), no pad

    out = pl.pallas_call(
        _folded_affine_kernel,
        out_shape=jax.ShapeDtypeStruct((OUT, 1), jnp.float32),
        in_specs=[
            pl.BlockSpec(memory_space=pltpu.MemorySpace.VMEM),   # x (1, K)
            pl.BlockSpec(memory_space=pltpu.MemorySpace.VMEM),   # A (OUT, K)
            pl.BlockSpec(memory_space=pltpu.MemorySpace.VMEM),   # c (OUT, 1)
        ],
        out_specs=pl.BlockSpec(memory_space=pltpu.MemorySpace.VMEM),
    )(x_flat, w_fold, b_fold)

    return out[:, 0]                        # (2,), metadata-only squeeze


# ----------------------------------------------------------------------------
# Unfolded layer-by-layer reference (mirrors the PyTorch module exactly).
# ----------------------------------------------------------------------------
def reference_forward(x, params):
    w1, b1, wm, bm, wo, bo = params
    h = x.reshape(-1).astype(jnp.float32)
    h = w1 @ h + b1
    for l in range(wm.shape[0]):
        h = wm[l] @ h + bm[l]
    return wo @ h + bo


if __name__ == "__main__":
    num_layers = 3
    # PyTorch forward flattens x, so input_size == numel(x).
    x_shape = (2, 4, 4, 4)
    input_size = 2 * 4 * 4 * 4              # 128

    key = jax.random.PRNGKey(0)
    kx, kp = jax.random.split(key)
    x = jax.random.normal(kx, x_shape, jnp.float32)
    params = init_params(kp, num_layers, input_size)

    w_fold, b_fold = prepare_folded_params(params)   # one-time prep

    out = test_net_forward(x, w_fold, b_fold)
    out = jax.block_until_ready(out)

    ref = reference_forward(x, params)
    assert out.shape == (2,)
    assert jnp.allclose(out, ref, atol=1e-4, rtol=1e-4)
    print("KERNEL_OK")
</pallas_src>

<mosaic_0001>
module attributes {stable_mosaic.version = 11 : i64} {
  func.func @_folded_affine_kernel(%arg0: memref<1x128xf32, #tpu.memory_space<vmem>>, %arg1: memref<2x128xf32, #tpu.memory_space<vmem>>, %arg2: memref<2x1xf32, #tpu.memory_space<vmem>>, %arg3: memref<2x1xf32, #tpu.memory_space<vmem>>) attributes {dimension_semantics = [], scalar_prefetch = 0 : i64, scratch_operands = 0 : i64, tpu.core_type = #tpu.core_type<tc>} {
    %c0 = arith.constant 0 : index
    %c0_0 = arith.constant 0 : index
    %0 = vector.load %arg0[%c0, %c0_0] : memref<1x128xf32, #tpu.memory_space<vmem>>, vector<1x128xf32>
    %c0_1 = arith.constant 0 : index
    %c0_2 = arith.constant 0 : index
    %1 = vector.load %arg1[%c0_1, %c0_2] : memref<2x128xf32, #tpu.memory_space<vmem>>, vector<2x128xf32>
    %2 = vector.broadcast %0 : vector<1x128xf32> to vector<2x128xf32>
    %3 = arith.mulf %2, %1 : vector<2x128xf32>
    %cst = arith.constant dense<0.000000e+00> : vector<2xf32>
    %4 = vector.multi_reduction <add>, %3, %cst [1] : vector<2x128xf32> to vector<2xf32>
    %5 = vector.shape_cast %4 : vector<2xf32> to vector<2x1xf32>
    %c0_3 = arith.constant 0 : index
    %c0_4 = arith.constant 0 : index
    %6 = vector.load %arg2[%c0_3, %c0_4] : memref<2x1xf32, #tpu.memory_space<vmem>>, vector<2x1xf32>
    %7 = arith.addf %5, %6 : vector<2x1xf32>
    %c0_5 = arith.constant 0 : index
    %c0_6 = arith.constant 0 : index
    %8 = vector.load %arg3[%c0_5, %c0_6] : memref<2x1xf32, #tpu.memory_space<vmem>>, vector<2x1xf32>
    tpu.vector_store %arg3[%c0_5, %c0_6], %7 {strides = array<i32>} : memref<2x1xf32, #tpu.memory_space<vmem>>, vector<2x1xf32>,
    return
  }
}

</mosaic_0001>

<llo_original>
// kernel: test_net_forward.1
$region0: #{test_net_forward.1}
  #allocation0 [shape = 'u32[]', space=smem, size = 0x4, offset = 0x4, fixed_abs, tag = 'smem constant byte address 0x4 - core index']
  #allocation1 [shape = 'u32[144,128]{1,0:T(1,128)}', space=vmem, size = 0x12000, scoped, tag = 'internal scratch']
  %s0 = inlined_call_operand.vmem [shape: f32[1,128], index: 0, kind: input, shape index: {}]
  %s1 = inlined_call_operand.vmem [shape: f32[2,128], index: 1, kind: input, shape index: {}]
  %s2 = inlined_call_operand.vmem [shape: f32[2,1], index: 2, kind: input, shape index: {}]
  %s3 = inlined_call_operand.vmem [shape: f32[2,1], index: 3, kind: output, shape index: {}]
  %s4 = sld [smem:[#allocation0]]
  $region22: #{test_net_forward.1} parent=0
    _
  %s6 = ssub.s32 1, %s4
  %s7 = scalar_select 0, %s6, %s4
  // Predicated region
  $region2: #{test_net_forward.1} parent=0 // pred_check
    _
  $region3: #{test_net_forward.1} parent=0 // pred_check_branch
    %9 = sbr.rel (0) target = $region5
  $region4: #{test_net_forward.1} parent=0 // pred_region
    _
  $region5: #{test_net_forward.1} parent=0 // pred_fallthru
    _
  // Predicated region
  $region6: #{test_net_forward.1} parent=0 // pred_check
    _
  $region7: #{test_net_forward.1} parent=0 // pred_check_branch
    %11 = sbr.rel (0) target = $region9
  $region8: #{test_net_forward.1} parent=0 // pred_region
    _
  $region9: #{test_net_forward.1} parent=0 // pred_fallthru
    _
  // Predicated region
  $region10: #{test_net_forward.1} parent=0 // pred_check
    _
  $region11: #{test_net_forward.1} parent=0 // pred_check_branch
    %13 = sbr.rel (0) target = $region13
  $region12: #{test_net_forward.1} parent=0 // pred_region
    _
  $region13: #{test_net_forward.1} parent=0 // pred_fallthru
    _
  %v14 = vld [vmem:[%s0] sm:$0x1]
  %v15 = vld [vmem:[%s1] sm:$0x3]
  %v17 = vlaneseq
  %v18 = vshrl.u32 %v17, 7
  %v19 = vsub.s32 0, %v18
  %v20 = vrot.slane %v14, %v19
  %v22 = vmul.f32 %v20, %v15
  %vm23 = vcmask 1041408
  %v24 = vsel %vm23, %v22, 0.0
  %25 = vadd.xlane.f32.xlu0 %v24
  %v26 = vpop.xlane.xlu0 %25
  %v27 = vld [vmem:[%s2] sm:$0x3]
  %v28 = vadd.f32 %v26, %v27
  %vm29 = vcmask 1024
  %30 = vst.msk [vmem:[%s3] sm:$0x3] %vm29, %v28
  // Predicated region
  $region14: #{test_net_forward.1} parent=0 // pred_check
    _
  $region15: #{test_net_forward.1} parent=0 // pred_check_branch
    %32 = sbr.rel (0) target = $region17
  $region16: #{test_net_forward.1} parent=0 // pred_region
    _
  $region17: #{test_net_forward.1} parent=0 // pred_fallthru
    _
  // Predicated region
  $region18: #{test_net_forward.1} parent=0 // pred_check
    _
  $region19: #{test_net_forward.1} parent=0 // pred_check_branch
    %34 = sbr.rel (0) target = $region21
  $region20: #{test_net_forward.1} parent=0 // pred_region
    _
  $region21: #{test_net_forward.1} parent=0 // pred_fallthru
    _

</llo_original>
